<compile_context>
chip_gen: v7x
topology: tpu7x:2x2x1
jax: 0.10.0
libtpu: 0.0.40
codegen_flags: <defaults>
</compile_context>

<pallas_src>
import jax
import jax.numpy as jnp
from jax.experimental import pallas as pl
from jax.experimental.pallas import tpu as pltpu

_LANES = 128
_SUBLANES = 8
# Contract the minor dim of both operands: A @ B^T on the MXU (flash-attn q @ k^T form).
_TRANS_B_DIMS = (((1,), (1,)), ((), ()))
# Scoped-VMEM limit: comfortably above what the default tiles use, below v7x's 64 MiB/TC.
_VMEM_LIMIT = 48 * 1024 * 1024


# ---------------------------------------------------------------------------
# Packed (lane-dense) path: state viewed as (B/P, 128) with P = 128 // D.
# ---------------------------------------------------------------------------
def _critic_kernel_packed(x_ref, w1b_ref, b1b_ref, w2b_ref, b2_ref, out_ref):
    x = x_ref[...]                                    # (tm_p, 128) packed state rows
    # Layer 1 for all P packed sub-rows at once: (tm_p,128) @ (128,P*H), f32 accumulate.
    h = jnp.dot(x, w1b_ref[...], preferred_element_type=jnp.float32)
    h = jnp.maximum(h + b1b_ref[...], 0.0)            # bias + ReLU (VPU, f32)
    # Value head: block-diagonal (P*H, P) matmul -> (tm_p, P).  MXU is idle anyway.
    v = jnp.dot(h, w2b_ref[...], preferred_element_type=jnp.float32)
    out_ref[...] = (v + b2_ref[0]).astype(out_ref.dtype)   # b2 scalar from SMEM


def _forward_packed(state, w1, b1, w2, b2, *, block_rows):
    B, D = state.shape
    H = w1.shape[0]
    P = _LANES // D                      # sub-rows packed into one 128-lane row
    rows_p = B // P                      # packed row count (caller checked B % P == 0)

    # Metadata-only reshape: contiguous row-major (B, D) -> (rows_p, 128).
    x_packed = state.reshape(rows_p, P * D)

    # Block-diagonal weights so the MXU consumes the packed layout directly (built once,
    # tiny: 128 x P*H and P*H x P).
    w1_big = jnp.kron(jnp.eye(P, dtype=w1.dtype), jnp.swapaxes(w1, 0, 1))  # (128, P*H)
    b1_big = jnp.tile(b1.reshape(1, H), (1, P))                            # (1, P*H)
    w2_big = jnp.kron(jnp.eye(P, dtype=w2.dtype), w2)                      # (P*H, P)

    # Tile selection: ~block_rows state rows per step (dense MiB-scale DMA blocks), and
    # keep >= 2 grid steps when the batch is big so v7x megacore shards the batch.
    tm_p_req = max(_SUBLANES, (block_rows // P // _SUBLANES) * _SUBLANES)
    if rows_p > tm_p_req:
        tm_p = tm_p_req                               # ragged last block handled by Pallas
    elif rows_p >= 1024:                              # >= ~8K state rows: split across 2 TCs
        tm_p = ((rows_p + 2 * _SUBLANES - 1) // (2 * _SUBLANES)) * _SUBLANES
    else:
        tm_p = rows_p                                 # single block == full array dims
    grid = (pl.cdiv(rows_p, tm_p),)

    flops = 2 * B * D * H + 2 * B * H
    bytes_accessed = (B * D + B) * state.dtype.itemsize + (P * D * P * H + P * H * (P + 1)) * 4

    out = pl.pallas_call(
        _critic_kernel_packed,
        out_shape=jax.ShapeDtypeStruct((rows_p, P), jnp.float32),
        grid=grid,
        in_specs=[
            pl.BlockSpec((tm_p, P * D), lambda i: (i, 0)),        # packed state, tiled
            pl.BlockSpec((P * D, P * H), lambda i: (0, 0)),       # W1_big resident in VMEM
            pl.BlockSpec((1, P * H), lambda i: (0, 0)),           # b1_big resident
            pl.BlockSpec((P * H, P), lambda i: (0, 0)),           # W2_big resident
            pl.BlockSpec(memory_space=pltpu.MemorySpace.SMEM),    # b2 scalar in SMEM
        ],
        out_specs=pl.BlockSpec((tm_p, P), lambda i: (i, 0)),
        compiler_params=pltpu.CompilerParams(
            dimension_semantics=("parallel",),
            vmem_limit_bytes=_VMEM_LIMIT,
        ),
        cost_estimate=pl.CostEstimate(flops=flops, transcendentals=0,
                                      bytes_accessed=bytes_accessed),
    )(x_packed, w1_big, b1_big, w2_big, b2)

    # (rows_p, P) row-major is exactly batch order -> metadata-only reshape back.
    return out.reshape(B, 1)


# ---------------------------------------------------------------------------
# Row-major fallback path (any D, ragged B): batch lives on the lane axis.
# ---------------------------------------------------------------------------
def _critic_kernel_rowmajor(x_ref, w1_ref, b1_ref, w2_ref, b2_ref, out_ref):
    x = x_ref[...]     # (tm, D)  batch tile of states
    w1 = w1_ref[...]   # (H, D)   torch layer1.weight layout
    # h^T = W1 @ x^T -> (H, tm): any transpose cost lands on tiny W1, not the state tile.
    h = jax.lax.dot_general(w1, x, _TRANS_B_DIMS, preferred_element_type=jnp.float32)
    h = jnp.maximum(h + b1_ref[...], 0.0)                   # (H,1) bias over lanes + ReLU
    v = jnp.sum(h * w2_ref[...], axis=0, keepdims=True)     # VPU value head, lane-dense
    out_ref[...] = (v + b2_ref[0]).astype(out_ref.dtype)


def _forward_rowmajor(state, w1, b1, w2, b2, *, block_rows):
    B, D = state.shape
    H = w1.shape[0]

    tm_req = max(_LANES, (block_rows // _LANES) * _LANES)
    # Lane-padded VMEM footprint: each (tm, D) state block costs tm * 128 * 4 B and is
    # double-buffered; budget ~1/4 of the scoped limit for it.
    tm_cap = (_VMEM_LIMIT // 4 // (2 * _LANES * 4)) // _LANES * _LANES
    tm_req = min(tm_req, max(_LANES, tm_cap))
    if B > tm_req:
        tm = tm_req                                     # ragged last block handled by Pallas
    elif B >= 8192:
        tm = ((B + 2 * _LANES - 1) // (2 * _LANES)) * _LANES   # 2 steps for v7x megacore
    else:
        tm = B                                          # single block == full array dims
    grid = (pl.cdiv(B, tm),)

    flops = 2 * B * D * H + 2 * B * H
    bytes_accessed = (B * D + B) * state.dtype.itemsize + (H * D + 2 * H + 1) * 4

    out = pl.pallas_call(
        _critic_kernel_rowmajor,
        out_shape=jax.ShapeDtypeStruct((1, B), jnp.float32),
        grid=grid,
        in_specs=[
            pl.BlockSpec((tm, D), lambda i: (i, 0)),              # state: tiled over batch
            pl.BlockSpec((H, D), lambda i: (0, 0)),               # W1 resident in VMEM
            pl.BlockSpec((H, 1), lambda i: (0, 0)),               # b1 column resident
            pl.BlockSpec((H, 1), lambda i: (0, 0)),               # w2 column resident
            pl.BlockSpec(memory_space=pltpu.MemorySpace.SMEM),    # b2 scalar in SMEM
        ],
        out_specs=pl.BlockSpec((1, tm), lambda i: (0, i)),        # lane-dense value row
        compiler_params=pltpu.CompilerParams(
            dimension_semantics=("parallel",),
            vmem_limit_bytes=_VMEM_LIMIT,
        ),
        cost_estimate=pl.CostEstimate(flops=flops, transcendentals=0,
                                      bytes_accessed=bytes_accessed),
    )(state, w1, b1, w2, b2)

    return out[0, :].reshape(B, 1)


def critic_forward(state, w1, b1, w2, b2, *, block_rows=32768):
    """Critic forward pass.

    state: (B, D); w1: (H, D) (torch layer1.weight); b1: (H, 1); w2: (H, 1)
    (torch layer2.weight^T); b2: (1,).  Returns (B, 1) f32, matching torch.
    """
    B, D = state.shape
    if 0 < D < _LANES and _LANES % D == 0 and B > 0 and B % (_LANES // D) == 0:
        return _forward_packed(state, w1, b1, w2, b2, block_rows=block_rows)
    return _forward_rowmajor(state, w1, b1, w2, b2, block_rows=block_rows)


def init_params(key, input_dim, hidden=32):
    # Deterministic init mimicking torch.nn.Linear default: U(-1/sqrt(fan_in), 1/sqrt(fan_in)).
    k1, k2, k3, k4 = jax.random.split(key, 4)
    bound1 = 1.0 / jnp.sqrt(jnp.float32(input_dim))
    bound2 = 1.0 / jnp.sqrt(jnp.float32(hidden))
    w1 = jax.random.uniform(k1, (hidden, input_dim), jnp.float32, -bound1, bound1)  # layer1.weight
    b1 = jax.random.uniform(k2, (hidden, 1), jnp.float32, -bound1, bound1)          # layer1.bias (col)
    w2 = jax.random.uniform(k3, (hidden, 1), jnp.float32, -bound2, bound2)          # layer2.weight^T (col)
    b2 = jax.random.uniform(k4, (1,), jnp.float32, -bound2, bound2)                 # layer2.bias
    return w1, b1, w2, b2


if __name__ == "__main__":
    key = jax.random.PRNGKey(0)
    k_in, k_param, k_in2 = jax.random.split(key, 3)

    D, H = 16, 32
    w1, b1, w2, b2 = init_params(k_param, D, hidden=H)

    def reference(s):
        # Plain-JAX reference matching the torch module semantics.
        return jnp.maximum(s @ w1.T + b1[:, 0], 0.0) @ w2 + b2

    # Packed lane-dense path (B is a multiple of 128 // D).
    B = 8
    state = jax.random.normal(k_in, (B, D), jnp.float32)
    out = jax.block_until_ready(critic_forward(state, w1, b1, w2, b2))
    assert out.shape == (B, 1)
    assert jnp.allclose(out, reference(state), atol=1e-4, rtol=1e-4)

    # Row-major fallback path (ragged batch size).
    B2 = 5
    state2 = jax.random.normal(k_in2, (B2, D), jnp.float32)
    out2 = jax.block_until_ready(critic_forward(state2, w1, b1, w2, b2))
    assert out2.shape == (B2, 1)
    assert jnp.allclose(out2, reference(state2), atol=1e-4, rtol=1e-4)

    print("KERNEL_OK")
</pallas_src>

<mosaic_0001>
module attributes {stable_mosaic.version = 11 : i64} {
  func.func @_critic_kernel_packed(%arg0: i32, %arg1: memref<1x128xf32, #tpu.memory_space<vmem>>, %arg2: memref<128x256xf32, #tpu.memory_space<vmem>>, %arg3: memref<1x256xf32, #tpu.memory_space<vmem>>, %arg4: memref<256x8xf32, #tpu.memory_space<vmem>>, %arg5: memref<1xf32, #tpu.memory_space<smem>>, %arg6: memref<1x8xf32, #tpu.memory_space<vmem>>) attributes {dimension_semantics = [#tpu.dimension_semantics<parallel>], iteration_bounds = array<i64: 1>, scalar_prefetch = 0 : i64, scratch_operands = 0 : i64, tpu.core_type = #tpu.core_type<tc>, window_params = [{transform_indices = @transform_0, window_bounds = array<i64: 1, 128>}, {pipeline_mode = #tpu.pipeline_mode<synchronous>, transform_indices = @transform_1, window_bounds = array<i64: 128, 256>}, {pipeline_mode = #tpu.pipeline_mode<synchronous>, transform_indices = @transform_2, window_bounds = array<i64: 1, 256>}, {pipeline_mode = #tpu.pipeline_mode<synchronous>, transform_indices = @transform_3, window_bounds = array<i64: 256, 8>}, {transform_indices = @transform_4, window_bounds = array<i64: 1>}, {transform_indices = @transform_5, window_bounds = array<i64: 1, 8>}]} {
    %c0 = arith.constant 0 : index
    %c0_0 = arith.constant 0 : index
    %0 = vector.load %arg1[%c0, %c0_0] : memref<1x128xf32, #tpu.memory_space<vmem>>, vector<1x128xf32>
    %c0_1 = arith.constant 0 : index
    %c0_2 = arith.constant 0 : index
    %1 = vector.load %arg2[%c0_1, %c0_2] : memref<128x256xf32, #tpu.memory_space<vmem>>, vector<128x256xf32>
    %cst = arith.constant dense<0.000000e+00> : vector<1x256xf32>
    %2 = tpu.matmul %0, %1, %cst {dimension_numbers = #tpu.dot_dimension_numbers<[1], [0], [0], [1], [0, 0, 1, 1], [], []>} : vector<1x128xf32>, vector<128x256xf32>, vector<1x256xf32> -> vector<1x256xf32>
    %c0_3 = arith.constant 0 : index
    %c0_4 = arith.constant 0 : index
    %3 = vector.load %arg3[%c0_3, %c0_4] : memref<1x256xf32, #tpu.memory_space<vmem>>, vector<1x256xf32>
    %4 = arith.addf %2, %3 : vector<1x256xf32>
    %cst_5 = arith.constant 0.000000e+00 : f32
    %5 = vector.broadcast %cst_5 : f32 to vector<1x256xf32>
    %6 = arith.maximumf %4, %5 : vector<1x256xf32>
    %c0_6 = arith.constant 0 : index
    %c0_7 = arith.constant 0 : index
    %7 = vector.load %arg4[%c0_6, %c0_7] : memref<256x8xf32, #tpu.memory_space<vmem>>, vector<256x8xf32>
    %cst_8 = arith.constant dense<0.000000e+00> : vector<1x8xf32>
    %8 = tpu.matmul %6, %7, %cst_8 {dimension_numbers = #tpu.dot_dimension_numbers<[1], [0], [0], [1], [0, 0, 1, 1], [], []>} : vector<1x256xf32>, vector<256x8xf32>, vector<1x8xf32> -> vector<1x8xf32>
    %c0_9 = arith.constant 0 : index
    %9 = memref.load %arg5[%c0_9] : memref<1xf32, #tpu.memory_space<smem>>
    %10 = vector.broadcast %9 : f32 to vector<1x8xf32>
    %11 = arith.addf %8, %10 : vector<1x8xf32>
    %c0_10 = arith.constant 0 : index
    %c0_11 = arith.constant 0 : index
    %12 = vector.load %arg6[%c0_10, %c0_11] : memref<1x8xf32, #tpu.memory_space<vmem>>, vector<1x8xf32>
    tpu.vector_store %arg6[%c0_10, %c0_11], %11 {strides = array<i32>} : memref<1x8xf32, #tpu.memory_space<vmem>>, vector<1x8xf32>,
    return
  }
  func.func @transform_0(%arg0: i32) -> (i32, i32) {
    %c0_i32 = arith.constant 0 : i32
    %c0_i32_0 = arith.constant 0 : i32
    return %arg0, %c0_i32 : i32, i32
  }
  func.func @transform_1(%arg0: i32) -> (i32, i32) {
    %c0_i32 = arith.constant 0 : i32
    %c0_i32_0 = arith.constant 0 : i32
    %c0_i32_1 = arith.constant 0 : i32
    return %c0_i32, %c0_i32_0 : i32, i32
  }
  func.func @transform_2(%arg0: i32) -> (i32, i32) {
    %c0_i32 = arith.constant 0 : i32
    %c0_i32_0 = arith.constant 0 : i32
    %c0_i32_1 = arith.constant 0 : i32
    return %c0_i32, %c0_i32_0 : i32, i32
  }
  func.func @transform_3(%arg0: i32) -> (i32, i32) {
    %c0_i32 = arith.constant 0 : i32
    %c0_i32_0 = arith.constant 0 : i32
    %c0_i32_1 = arith.constant 0 : i32
    return %c0_i32, %c0_i32_0 : i32, i32
  }
  func.func @transform_4(%arg0: i32) -> i32 {
    %c0_i32 = arith.constant 0 : i32
    %c0_i32_0 = arith.constant 0 : i32
    return %c0_i32 : i32
  }
  func.func @transform_5(%arg0: i32) -> (i32, i32) {
    %c0_i32 = arith.constant 0 : i32
    %c0_i32_0 = arith.constant 0 : i32
    return %arg0, %c0_i32 : i32, i32
  }
}

</mosaic_0001>

<llo_original>
// kernel: tpu_custom_call.1
$region0: #{tpu_custom_call.1}
  #allocation0 [shape = 'u32[]', space=smem, size = 0x4, offset = 0x4, fixed_abs, tag = 'smem constant byte address 0x4 - core index']
  #allocation1 [shape = 'u32[144,128]{1,0:T(1,128)}', space=vmem, size = 0x12000, scoped, tag = 'internal scratch']
  #allocation2 [shape = 'f32[1]{0:T(128)S(6)}', space=smem, size = 0x200, scoped, tag = 'scoped memory for tpu_custom_call.1']
  %s0 = inlined_call_operand.vmem [shape: f32[1,128], index: 0, kind: input, shape index: {}]
  %s1 = inlined_call_operand.vmem [shape: f32[128,256], index: 1, kind: input, shape index: {}]
  %s2 = inlined_call_operand.vmem [shape: f32[1,256], index: 2, kind: input, shape index: {}]
  %s3 = inlined_call_operand.vmem [shape: f32[256,8], index: 3, kind: input, shape index: {}]
  %s4 = inlined_call_operand.<no memory space> [shape: f32[1], index: 4, kind: input, shape index: {}]
  %s5 = inlined_call_operand.hbm [shape: f32[1,8], index: 5, kind: output, shape index: {}]
  %s6 = sld [smem:[#allocation0]]
  $region30: #{tpu_custom_call.1} parent=0
    _
  %s8 = ssub.s32 1, %s6
  %s9 = scalar_select 0, %s8, %s6
  %10 = sst [smem:[#allocation2]] %s4
  $region1: #{tpu_custom_call.1} parent=0
    #allocation3 [shape = 'u8[512]{0}', space=vmem, size = 0x400, scoped, tag = 'output window, operand 0, single buffered']
    #allocation4 [shape = 's32[1]{0}', space=sflag, size = 0x4, scoped, tag = 'scoped memory for tpu_custom_call.1']
    %11 = vsyncpa [#allocation4], 0
    // Predicated region
    $region2: #{tpu_custom_call.1} parent=1 // pred_check
      _
    $region3: #{tpu_custom_call.1} parent=1 // pred_check_branch
      %13 = sbr.rel (0) target = $region5
    $region4: #{tpu_custom_call.1} parent=1 // pred_region
      _
    $region5: #{tpu_custom_call.1} parent=1 // pred_fallthru
      _
    // Predicated region
    $region6: #{tpu_custom_call.1} parent=1 // pred_check
      _
    $region7: #{tpu_custom_call.1} parent=1 // pred_check_branch
      %15 = sbr.rel (0) target = $region9
    $region8: #{tpu_custom_call.1} parent=1 // pred_region
      _
    $region9: #{tpu_custom_call.1} parent=1 // pred_fallthru
      _
    // Predicated region
    $region10: #{tpu_custom_call.1} parent=1 // pred_check
      _
    $region11: #{tpu_custom_call.1} parent=1 // pred_check_branch
      %17 = sbr.rel (0) target = $region13
    $region12: #{tpu_custom_call.1} parent=1 // pred_region
      _
    $region13: #{tpu_custom_call.1} parent=1 // pred_fallthru
      _
    // Predicated region
    $region14: #{tpu_custom_call.1} parent=1 // pred_check
      _
    $region15: #{tpu_custom_call.1} parent=1 // pred_check_branch
      %19 = sbr.rel (0) target = $region17
    $region16: #{tpu_custom_call.1} parent=1 // pred_region
      _
    $region17: #{tpu_custom_call.1} parent=1 // pred_fallthru
      _
    // Predicated region
    $region18: #{tpu_custom_call.1} parent=1 // pred_check
      _
    $region19: #{tpu_custom_call.1} parent=1 // pred_check_branch
      %21 = sbr.rel (0) target = $region21
    $region20: #{tpu_custom_call.1} parent=1 // pred_region
      _
    $region21: #{tpu_custom_call.1} parent=1 // pred_fallthru
      _
    %v22 = vld [vmem:[%s0] sm:$0x1]
    %v23 = vld [vmem:[%s1] sm:$0xff]
    %v24 = vld [vmem:[%s1 + $0x8] sm:$0xff]
    %v25 = vld [vmem:[%s1 + $0x10] sm:$0xff]
    %v26 = vld [vmem:[%s1 + $0x18] sm:$0xff]
    %v27 = vld [vmem:[%s1 + $0x20] sm:$0xff]
    %v28 = vld [vmem:[%s1 + $0x28] sm:$0xff]
    %v29 = vld [vmem:[%s1 + $0x30] sm:$0xff]
    %v30 = vld [vmem:[%s1 + $0x38] sm:$0xff]
    %v31 = vld [vmem:[%s1 + $0x40] sm:$0xff]
    %v32 = vld [vmem:[%s1 + $0x48] sm:$0xff]
    %v33 = vld [vmem:[%s1 + $0x50] sm:$0xff]
    %v34 = vld [vmem:[%s1 + $0x58] sm:$0xff]
    %v35 = vld [vmem:[%s1 + $0x60] sm:$0xff]
    %v36 = vld [vmem:[%s1 + $0x68] sm:$0xff]
    %v37 = vld [vmem:[%s1 + $0x70] sm:$0xff]
    %v38 = vld [vmem:[%s1 + $0x78] sm:$0xff]
    %v39 = vld [vmem:[%s1 + $0x80] sm:$0xff]
    %v40 = vld [vmem:[%s1 + $0x88] sm:$0xff]
    %v41 = vld [vmem:[%s1 + $0x90] sm:$0xff]
    %v42 = vld [vmem:[%s1 + $0x98] sm:$0xff]
    %v43 = vld [vmem:[%s1 + $0xa0] sm:$0xff]
    %v44 = vld [vmem:[%s1 + $0xa8] sm:$0xff]
    %v45 = vld [vmem:[%s1 + $0xb0] sm:$0xff]
    %v46 = vld [vmem:[%s1 + $0xb8] sm:$0xff]
    %v47 = vld [vmem:[%s1 + $0xc0] sm:$0xff]
    %v48 = vld [vmem:[%s1 + $0xc8] sm:$0xff]
    %v49 = vld [vmem:[%s1 + $0xd0] sm:$0xff]
    %v50 = vld [vmem:[%s1 + $0xd8] sm:$0xff]
    %v51 = vld [vmem:[%s1 + $0xe0] sm:$0xff]
    %v52 = vld [vmem:[%s1 + $0xe8] sm:$0xff]
    %v53 = vld [vmem:[%s1 + $0xf0] sm:$0xff]
    %v54 = vld [vmem:[%s1 + $0xf8] sm:$0xff]
    %v55 = vld [vmem:[%s2] sm:$0x3]
    %v57 = vlaneseq
    %v58 = vshrl.u32 %v57, 7
    %v59 = vsub.s32 0, %v58
    %v60 = vrot.slane %v55, %v59
    %v61 = vlaneseq
    %v62 = vshrl.u32 %v61, 7
    %v63 = vsub.s32 1, %v62
    %v64 = vrot.slane %v55, %v63
    %67 = vmatprep.subr.mxu0 %v24
    %68 = vmatpush1.msra.mxu0 %v23
    %69 = vmatprep.subr.mxu0 %v26
    %70 = vmatpush1.msra.mxu0 %v25
    %71 = vmatprep.subr.mxu0 %v28
    %72 = vmatpush1.msra.mxu0 %v27
    %73 = vmatprep.subr.mxu0 %v30
    %74 = vmatpush1.msra.mxu0 %v29
    %75 = vmatprep.subr.mxu0 %v32
    %76 = vmatpush1.msra.mxu0 %v31
    %77 = vmatprep.subr.mxu0 %v34
    %78 = vmatpush1.msra.mxu0 %v33
    %79 = vmatprep.subr.mxu0 %v36
    %80 = vmatpush1.msra.mxu0 %v35
    %81 = vmatprep.subr.mxu0 %v38
    %82 = vmatpush1.msra.mxu0 %v37
    %83 = vmatprep.subr.mxu0 %v40
    %84 = vmatpush1.msra.mxu0 %v39
    %85 = vmatprep.subr.mxu0 %v42
    %86 = vmatpush1.msra.mxu0 %v41
    %87 = vmatprep.subr.mxu0 %v44
    %88 = vmatpush1.msra.mxu0 %v43
    %89 = vmatprep.subr.mxu0 %v46
    %90 = vmatpush1.msra.mxu0 %v45
    %91 = vmatprep.subr.mxu0 %v48
    %92 = vmatpush1.msra.mxu0 %v47
    %93 = vmatprep.subr.mxu0 %v50
    %94 = vmatpush1.msra.mxu0 %v49
    %95 = vmatprep.subr.mxu0 %v52
    %96 = vmatpush1.msra.mxu0 %v51
    %97 = vmatprep.subr.mxu0 %v54
    %98 = vmatpush1.msra.mxu0 %v53
    %99 = vmatprep.subr.mxu0 0.0
    %100 = vmatpush1.msra.mxu0 0.0
    %101 = vmatprep.subr.mxu0 0.0
    %102 = vmatpush1.msra.mxu0 0.0
    %103 = vmatprep.subr.mxu0 0.0
    %104 = vmatpush1.msra.mxu0 0.0
    %105 = vmatprep.subr.mxu0 0.0
    %106 = vmatpush1.msra.mxu0 0.0
    %107 = vmatprep.subr.mxu0 0.0
    %108 = vmatpush1.msra.mxu0 0.0
    %109 = vmatprep.subr.mxu0 0.0
    %110 = vmatpush1.msra.mxu0 0.0
    %111 = vmatprep.subr.mxu0 0.0
    %112 = vmatpush1.msra.mxu0 0.0
    %113 = vmatprep.subr.mxu0 0.0
    %114 = vmatpush1.msra.mxu0 0.0
    %115 = vmatprep.subr.mxu0 0.0
    %116 = vmatpush1.msra.mxu0 0.0
    %117 = vmatprep.subr.mxu0 0.0
    %118 = vmatpush1.msra.mxu0 0.0
    %119 = vmatprep.subr.mxu0 0.0
    %120 = vmatpush1.msra.mxu0 0.0
    %121 = vmatprep.subr.mxu0 0.0
    %122 = vmatpush1.msra.mxu0 0.0
    %123 = vmatprep.subr.mxu0 0.0
    %124 = vmatpush1.msra.mxu0 0.0
    %125 = vmatprep.subr.mxu0 0.0
    %126 = vmatpush1.msra.mxu0 0.0
    %127 = vmatprep.subr.mxu0 0.0
    %128 = vmatpush1.msra.mxu0 0.0
    %129 = vmatprep.subr.mxu0 0.0
    %130 = vmatpush1.msra.mxu0 0.0
    %131 = vmatprep.mubr.f32.mxu0 0.0
    %132 = vmatmul.mubr.f32.gmra.mrb[0].mxu0 %v22
    %v133 = vpop.f32.mrb[0].mxu0
    %v134 = vadd.f32 %v60, %v133
    %v135 = vpop.f32.mrb[0].mxu0
    %v136 = vadd.f32 %v64, %v135
    %137 = vdwg.mxu0
    %v138 = vmax.f32 %v134, 0.0
    %v139 = vmax.f32 %v136, 0.0
    %v140 = vld [vmem:[%s3] sm:$0xff]
    %v141 = vld [vmem:[%s3 + $0x8] sm:$0xff]
    %v142 = vld [vmem:[%s3 + $0x10] sm:$0xff]
    %v143 = vld [vmem:[%s3 + $0x18] sm:$0xff]
    %v144 = vld [vmem:[%s3 + $0x20] sm:$0xff]
    %v145 = vld [vmem:[%s3 + $0x28] sm:$0xff]
    %v146 = vld [vmem:[%s3 + $0x30] sm:$0xff]
    %v147 = vld [vmem:[%s3 + $0x38] sm:$0xff]
    %v148 = vld [vmem:[%s3 + $0x40] sm:$0xff]
    %v149 = vld [vmem:[%s3 + $0x48] sm:$0xff]
    %v150 = vld [vmem:[%s3 + $0x50] sm:$0xff]
    %v151 = vld [vmem:[%s3 + $0x58] sm:$0xff]
    %v152 = vld [vmem:[%s3 + $0x60] sm:$0xff]
    %v153 = vld [vmem:[%s3 + $0x68] sm:$0xff]
    %v154 = vld [vmem:[%s3 + $0x70] sm:$0xff]
    %v155 = vld [vmem:[%s3 + $0x78] sm:$0xff]
    %v156 = vld [vmem:[%s3 + $0x80] sm:$0xff]
    %v157 = vld [vmem:[%s3 + $0x88] sm:$0xff]
    %v158 = vld [vmem:[%s3 + $0x90] sm:$0xff]
    %v159 = vld [vmem:[%s3 + $0x98] sm:$0xff]
    %v160 = vld [vmem:[%s3 + $0xa0] sm:$0xff]
    %v161 = vld [vmem:[%s3 + $0xa8] sm:$0xff]
    %v162 = vld [vmem:[%s3 + $0xb0] sm:$0xff]
    %v163 = vld [vmem:[%s3 + $0xb8] sm:$0xff]
    %v164 = vld [vmem:[%s3 + $0xc0] sm:$0xff]
    %v165 = vld [vmem:[%s3 + $0xc8] sm:$0xff]
    %v166 = vld [vmem:[%s3 + $0xd0] sm:$0xff]
    %v167 = vld [vmem:[%s3 + $0xd8] sm:$0xff]
    %v168 = vld [vmem:[%s3 + $0xe0] sm:$0xff]
    %v169 = vld [vmem:[%s3 + $0xe8] sm:$0xff]
    %v170 = vld [vmem:[%s3 + $0xf0] sm:$0xff]
    %v171 = vld [vmem:[%s3 + $0xf8] sm:$0xff]
    %s172 = sld [smem:[#allocation2]]
    %v173 = vstv %s172
    %174 = vmatprep.subr.mxu0 0.0
    %175 = vmatpush1.msra.mxu0 %v140
    %176 = vmatprep.subr.mxu0 0.0
    %177 = vmatpush1.msra.mxu0 %v141
    %178 = vmatprep.subr.mxu0 0.0
    %179 = vmatpush1.msra.mxu0 %v142
    %180 = vmatprep.subr.mxu0 0.0
    %181 = vmatpush1.msra.mxu0 %v143
    %182 = vmatprep.subr.mxu0 0.0
    %183 = vmatpush1.msra.mxu0 %v144
    %184 = vmatprep.subr.mxu0 0.0
    %185 = vmatpush1.msra.mxu0 %v145
    %186 = vmatprep.subr.mxu0 0.0
    %187 = vmatpush1.msra.mxu0 %v146
    %188 = vmatprep.subr.mxu0 0.0
    %189 = vmatpush1.msra.mxu0 %v147
    %190 = vmatprep.subr.mxu0 0.0
    %191 = vmatpush1.msra.mxu0 %v148
    %192 = vmatprep.subr.mxu0 0.0
    %193 = vmatpush1.msra.mxu0 %v149
    %194 = vmatprep.subr.mxu0 0.0
    %195 = vmatpush1.msra.mxu0 %v150
    %196 = vmatprep.subr.mxu0 0.0
    %197 = vmatpush1.msra.mxu0 %v151
    %198 = vmatprep.subr.mxu0 0.0
    %199 = vmatpush1.msra.mxu0 %v152
    %200 = vmatprep.subr.mxu0 0.0
    %201 = vmatpush1.msra.mxu0 %v153
    %202 = vmatprep.subr.mxu0 0.0
    %203 = vmatpush1.msra.mxu0 %v154
    %204 = vmatprep.subr.mxu0 0.0
    %205 = vmatpush1.msra.mxu0 %v155
    %206 = vmatprep.subr.mxu0 0.0
    %207 = vmatpush1.msra.mxu0 %v156
    %208 = vmatprep.subr.mxu0 0.0
    %209 = vmatpush1.msra.mxu0 %v157
    %210 = vmatprep.subr.mxu0 0.0
    %211 = vmatpush1.msra.mxu0 %v158
    %212 = vmatprep.subr.mxu0 0.0
    %213 = vmatpush1.msra.mxu0 %v159
    %214 = vmatprep.subr.mxu0 0.0
    %215 = vmatpush1.msra.mxu0 %v160
    %216 = vmatprep.subr.mxu0 0.0
    %217 = vmatpush1.msra.mxu0 %v161
    %218 = vmatprep.subr.mxu0 0.0
    %219 = vmatpush1.msra.mxu0 %v162
    %220 = vmatprep.subr.mxu0 0.0
    %221 = vmatpush1.msra.mxu0 %v163
    %222 = vmatprep.subr.mxu0 0.0
    %223 = vmatpush1.msra.mxu0 %v164
    %224 = vmatprep.subr.mxu0 0.0
    %225 = vmatpush1.msra.mxu0 %v165
    %226 = vmatprep.subr.mxu0 0.0
    %227 = vmatpush1.msra.mxu0 %v166
    %228 = vmatprep.subr.mxu0 0.0
    %229 = vmatpush1.msra.mxu0 %v167
    %230 = vmatprep.subr.mxu0 0.0
    %231 = vmatpush1.msra.mxu0 %v168
    %232 = vmatprep.subr.mxu0 0.0
    %233 = vmatpush1.msra.mxu0 %v169
    %234 = vmatprep.subr.mxu0 0.0
    %235 = vmatpush1.msra.mxu0 %v170
    %236 = vmatprep.subr.mxu0 0.0
    %237 = vmatpush1.msra.mxu0 %v171
    %238 = vmatprep.mubr.f32.mxu0 %v139
    %239 = vmatmul.mubr.f32.gmra.mrb[0].mxu0 %v138
    %v240 = vpop.f32.mrb[0].mxu0
    %v241 = vadd.f32 %v173, %v240
    %v242 = vpop.f32.mrb[0].mxu0
    %243 = vdwg.mxu0
    %vm244 = vcmask 57344
    %245 = vst.msk [vmem:[#allocation3] sm:$0x1] %vm244, %v241
    // Predicated region
    $region22: #{tpu_custom_call.1} parent=1 // pred_check
      _
    $region23: #{tpu_custom_call.1} parent=1 // pred_check_branch
      %247 = sbr.rel (0) target = $region25
    $region24: #{tpu_custom_call.1} parent=1 // pred_region
      %s249 = ssub.s32 16, 16
      %250 = vsyncadd [#allocation4], %s249
      %s252 = sshll.u32 [#allocation3], 4
      %s253 = int_to_ptr.vmem [resolvable:$true] %s252
      %255 = dma.vmem_to_hbm [thread:$0]  %s253, 16, %s5, [#allocation4]
    $region25: #{tpu_custom_call.1} parent=1 // pred_fallthru
      _
    // Predicated region
    $region26: #{tpu_custom_call.1} parent=1 // pred_check
      _
    $region27: #{tpu_custom_call.1} parent=1 // pred_check_branch
      %257 = sbr.rel (0) target = $region29
    $region28: #{tpu_custom_call.1} parent=1 // pred_region
      %258 = dma.done [#allocation4], 16
    $region29: #{tpu_custom_call.1} parent=1 // pred_fallthru
      _
    %259 = vsyncpa [#allocation4], 1

</llo_original>
